<compile_context>
chip_gen: v7x
topology: tpu7x:2x2x1
jax: 0.10.0
libtpu: 0.0.40
codegen_flags: <defaults>
</compile_context>

<pallas_src>
import jax
import jax.numpy as jnp
from jax.experimental import pallas as pl
from jax.experimental.pallas import tpu as pltpu

M_IN, N_HID, K_OUT = 64, 32, 64   # matches ToyLinearModel(m=64, n=32, k=64)
LANE = 128


def _round_up(x, m):
    return ((x + m - 1) // m) * m


def toy_linear_kernel(x_ref, w_ref, o_ref):
    # Single fused MXU matmul: x @ (W1^T @ W2^T), f32 accumulation, lane-dense
    # (128-wide) store.
    o_ref[...] = jnp.dot(
        x_ref[...], w_ref[...], preferred_element_type=jnp.float32
    ).astype(o_ref.dtype)


def toy_linear_forward(x, w1, w2, *, tb=1024):
    """ToyLinearModel forward: x @ w1.T @ w2.T (both linears bias-free).

    x : (batch, m) f32, w1: (n, m) f32 (torch layout), w2: (k, n) f32.
    tb: batch tile (rows per grid step); must be a multiple of 8.
    """
    b, m = x.shape
    n = w1.shape[0]
    k = w2.shape[0]
    assert w1.shape == (n, m) and w2.shape == (k, n)
    assert tb % 8 == 0

    # Fuse the two weight matrices once (tiny (m,n)@(n,k) done by XLA);
    # amortized over the whole batch.
    w_fused = jnp.dot(w1.T, w2.T, preferred_element_type=jnp.float32)  # (m, k)

    # Pad the fused weight's output dim to a multiple of 128 lanes so the
    # kernel's output block last dim is lane-dense (unmasked stores).
    k_pad = _round_up(k, LANE)
    if k_pad != k:
        w_fused = jnp.pad(w_fused, ((0, 0), (0, k_pad - k)))

    # Batch tiling:
    #  - b <= tb: one full-extent block (no padding / masking at all).
    #  - b  > tb: tile by tb; Pallas pads the ragged last block on read and
    #             discards the out-of-range output rows (rows are independent,
    #             so garbage padding rows cannot contaminate valid rows).
    tb_eff = b if b <= tb else tb
    grid = (pl.cdiv(b, tb_eff),)

    out = pl.pallas_call(
        toy_linear_kernel,
        out_shape=jax.ShapeDtypeStruct((b, k_pad), jnp.float32),
        grid_spec=pltpu.PrefetchScalarGridSpec(
            num_scalar_prefetch=0,
            grid=grid,
            in_specs=[
                pl.BlockSpec((tb_eff, m), lambda i: (i, 0)),   # x row tile
                pl.BlockSpec((m, k_pad), lambda i: (0, 0)),    # fused W, resident
            ],
            out_specs=pl.BlockSpec((tb_eff, k_pad), lambda i: (i, 0)),
        ),
        compiler_params=pltpu.CompilerParams(
            dimension_semantics=("parallel",),  # batch tiles shard across TCs (v7x)
        ),
    )(x, w_fused)

    # Drop the lane padding back to the true output width.
    return out[:, :k]


if __name__ == "__main__":
    key = jax.random.PRNGKey(0)
    kx, k1, k2, kx2 = jax.random.split(key, 4)

    # torch.nn.Linear-style init: uniform(-1/sqrt(fan_in), 1/sqrt(fan_in)).
    bound1 = 1.0 / jnp.sqrt(M_IN)
    bound2 = 1.0 / jnp.sqrt(N_HID)
    w1 = jax.random.uniform(k1, (N_HID, M_IN), jnp.float32, -bound1, bound1)
    w2 = jax.random.uniform(k2, (K_OUT, N_HID), jnp.float32, -bound2, bound2)

    # Small example input, as in ToyLinearModel.example_inputs (batch=2).
    batch = 2
    x = jax.random.normal(kx, (batch, M_IN), dtype=jnp.float32)

    y = jax.block_until_ready(toy_linear_forward(x, w1, w2))
    y_ref = (x @ w1.T) @ w2.T
    assert y.shape == (batch, K_OUT)
    assert jnp.allclose(y, y_ref, atol=2e-4, rtol=2e-4)

    # Larger, non-tile-multiple batch: exercises the multi-step grid and the
    # ragged final block.
    big = 1000
    xb = jax.random.normal(kx2, (big, M_IN), dtype=jnp.float32)
    yb = jax.block_until_ready(toy_linear_forward(xb, w1, w2, tb=512))
    yb_ref = (xb @ w1.T) @ w2.T
    assert yb.shape == (big, K_OUT)
    assert jnp.allclose(yb, yb_ref, atol=2e-4, rtol=2e-4)

    print("KERNEL_OK")
</pallas_src>

<mosaic_0001>
module attributes {stable_mosaic.version = 11 : i64} {
  func.func @toy_linear_kernel(%arg0: i32, %arg1: memref<2x64xf32, #tpu.memory_space<vmem>>, %arg2: memref<64x128xf32, #tpu.memory_space<vmem>>, %arg3: memref<2x128xf32, #tpu.memory_space<vmem>>) attributes {dimension_semantics = [#tpu.dimension_semantics<parallel>], iteration_bounds = array<i64: 1>, scalar_prefetch = 0 : i64, scratch_operands = 0 : i64, tpu.core_type = #tpu.core_type<tc>, window_params = [{transform_indices = @transform_0, window_bounds = array<i64: 2, 64>}, {pipeline_mode = #tpu.pipeline_mode<synchronous>, transform_indices = @transform_1, window_bounds = array<i64: 64, 128>}, {transform_indices = @transform_2, window_bounds = array<i64: 2, 128>}]} {
    %c0 = arith.constant 0 : index
    %c0_0 = arith.constant 0 : index
    %0 = vector.load %arg1[%c0, %c0_0] : memref<2x64xf32, #tpu.memory_space<vmem>>, vector<2x64xf32>
    %c0_1 = arith.constant 0 : index
    %c0_2 = arith.constant 0 : index
    %1 = vector.load %arg2[%c0_1, %c0_2] : memref<64x128xf32, #tpu.memory_space<vmem>>, vector<64x128xf32>
    %cst = arith.constant dense<0.000000e+00> : vector<2x128xf32>
    %2 = tpu.matmul %0, %1, %cst {dimension_numbers = #tpu.dot_dimension_numbers<[1], [0], [0], [1], [0, 0, 1, 1], [], []>} : vector<2x64xf32>, vector<64x128xf32>, vector<2x128xf32> -> vector<2x128xf32>
    %c0_3 = arith.constant 0 : index
    %c0_4 = arith.constant 0 : index
    %3 = vector.load %arg3[%c0_3, %c0_4] : memref<2x128xf32, #tpu.memory_space<vmem>>, vector<2x128xf32>
    tpu.vector_store %arg3[%c0_3, %c0_4], %2 {strides = array<i32>} : memref<2x128xf32, #tpu.memory_space<vmem>>, vector<2x128xf32>,
    return
  }
  func.func @transform_0(%arg0: i32) -> (i32, i32) {
    %c0_i32 = arith.constant 0 : i32
    %c0_i32_0 = arith.constant 0 : i32
    return %arg0, %c0_i32 : i32, i32
  }
  func.func @transform_1(%arg0: i32) -> (i32, i32) {
    %c0_i32 = arith.constant 0 : i32
    %c0_i32_0 = arith.constant 0 : i32
    %c0_i32_1 = arith.constant 0 : i32
    return %c0_i32, %c0_i32_0 : i32, i32
  }
  func.func @transform_2(%arg0: i32) -> (i32, i32) {
    %c0_i32 = arith.constant 0 : i32
    %c0_i32_0 = arith.constant 0 : i32
    return %arg0, %c0_i32 : i32, i32
  }
}

</mosaic_0001>

<llo_original>
// kernel: tpu_custom_call.1
$region0: #{tpu_custom_call.1}
  #allocation0 [shape = 'u32[]', space=smem, size = 0x4, offset = 0x4, fixed_abs, tag = 'smem constant byte address 0x4 - core index']
  #allocation1 [shape = 'u32[144,128]{1,0:T(1,128)}', space=vmem, size = 0x12000, scoped, tag = 'internal scratch']
  %s0 = inlined_call_operand.hbm [shape: f32[2,64], index: 0, kind: input, shape index: {}]
  %s1 = inlined_call_operand.hbm [shape: f32[64,128], index: 1, kind: input, shape index: {}]
  %s2 = inlined_call_operand.hbm [shape: f32[2,128], index: 2, kind: output, shape index: {}]
  %s3 = sld [smem:[#allocation0]]
  $region26: #{tpu_custom_call.1} parent=0
    _
  %s5 = ssub.s32 1, %s3
  %s6 = scalar_select 0, %s5, %s3
  $region1: #{tpu_custom_call.1} parent=0
    #allocation2 [shape = 'u8[1024]{0}', space=vmem, size = 0x400, scoped, tag = 'input window, operand 0, single buffered']
    #allocation3 [shape = 's32[1]{0}', space=sflag, size = 0x4, scoped, tag = 'scoped memory for tpu_custom_call.1']
    #allocation4 [shape = 's32[1]{0}', space=sflag, size = 0x4, scoped, tag = 'scoped memory for tpu_custom_call.1']
    #allocation5 [shape = 'u8[32768]{0}', space=vmem, size = 0x8000, scoped, tag = 'input window, operand 1, single buffered']
    #allocation6 [shape = 's32[1]{0}', space=sflag, size = 0x4, scoped, tag = 'scoped memory for tpu_custom_call.1']
    #allocation7 [shape = 'u8[1024]{0}', space=vmem, size = 0x400, scoped, tag = 'output window, operand 0, single buffered']
    %7 = vsyncpa [#allocation3], 0
    %8 = vsyncpa [#allocation6], 0
    %9 = vsyncpa [#allocation4], 0
    // Predicated region
    $region2: #{tpu_custom_call.1} parent=1 // pred_check
      _
    $region3: #{tpu_custom_call.1} parent=1 // pred_check_branch
      %11 = sbr.rel (0) target = $region5
    $region4: #{tpu_custom_call.1} parent=1 // pred_region
      %s13 = ssub.s32 32, 32
      %14 = vsyncadd [#allocation3], %s13
      %s16 = sshll.u32 [#allocation2], 4
      %s17 = int_to_ptr.vmem [resolvable:$true] %s16
      %19 = dma.hbm_to_vmem [thread:$0]  %s0, 32, %s17, [#allocation3]
    $region5: #{tpu_custom_call.1} parent=1 // pred_fallthru
      _
    // Predicated region
    $region6: #{tpu_custom_call.1} parent=1 // pred_check
      _
    $region7: #{tpu_custom_call.1} parent=1 // pred_check_branch
      %21 = sbr.rel (0) target = $region9
    $region8: #{tpu_custom_call.1} parent=1 // pred_region
      %s23 = ssub.s32 1024, 1024
      %24 = vsyncadd [#allocation6], %s23
      %s25 = sshll.u32 [#allocation5], 4
      %s26 = int_to_ptr.vmem [resolvable:$true] %s25
      %31 = dma.hbm_to_vmem [thread:$0]  %s1, 1024, %s26, [#allocation6], 128, 128, 8
    $region9: #{tpu_custom_call.1} parent=1 // pred_fallthru
      _
    // Predicated region
    $region10: #{tpu_custom_call.1} parent=1 // pred_check
      _
    $region11: #{tpu_custom_call.1} parent=1 // pred_check_branch
      %33 = sbr.rel (0) target = $region13
    $region12: #{tpu_custom_call.1} parent=1 // pred_region
      %34 = dma.done [#allocation3], 32
    $region13: #{tpu_custom_call.1} parent=1 // pred_fallthru
      _
    // Predicated region
    $region14: #{tpu_custom_call.1} parent=1 // pred_check
      _
    $region15: #{tpu_custom_call.1} parent=1 // pred_check_branch
      %36 = sbr.rel (0) target = $region17
    $region16: #{tpu_custom_call.1} parent=1 // pred_region
      %37 = dma.done [#allocation6], 1024
    $region17: #{tpu_custom_call.1} parent=1 // pred_fallthru
      _
    %v38 = vld [vmem:[#allocation2] sm:$0x3]
    %v39 = vld [vmem:[#allocation5] sm:$0xff]
    %v40 = vld [vmem:[#allocation5 + $0x8] sm:$0xff]
    %v41 = vld [vmem:[#allocation5 + $0x10] sm:$0xff]
    %v42 = vld [vmem:[#allocation5 + $0x18] sm:$0xff]
    %v43 = vld [vmem:[#allocation5 + $0x20] sm:$0xff]
    %v44 = vld [vmem:[#allocation5 + $0x28] sm:$0xff]
    %v45 = vld [vmem:[#allocation5 + $0x30] sm:$0xff]
    %v46 = vld [vmem:[#allocation5 + $0x38] sm:$0xff]
    %vm47 = vcmask 523264
    %v49 = vsel %vm47, %v38, 0
    %51 = vmatprep.subr.mxu0 0.0
    %52 = vmatpush1.msra.mxu0 %v39
    %53 = vmatprep.subr.mxu0 0.0
    %54 = vmatpush1.msra.mxu0 %v40
    %55 = vmatprep.subr.mxu0 0.0
    %56 = vmatpush1.msra.mxu0 %v41
    %57 = vmatprep.subr.mxu0 0.0
    %58 = vmatpush1.msra.mxu0 %v42
    %59 = vmatprep.subr.mxu0 0.0
    %60 = vmatpush1.msra.mxu0 %v43
    %61 = vmatprep.subr.mxu0 0.0
    %62 = vmatpush1.msra.mxu0 %v44
    %63 = vmatprep.subr.mxu0 0.0
    %64 = vmatpush1.msra.mxu0 %v45
    %65 = vmatprep.subr.mxu0 0.0
    %66 = vmatpush1.msra.mxu0 %v46
    %67 = vmatprep.subr.mxu0 0.0
    %68 = vmatpush1.msra.mxu0 0.0
    %69 = vmatprep.subr.mxu0 0.0
    %70 = vmatpush1.msra.mxu0 0.0
    %71 = vmatprep.subr.mxu0 0.0
    %72 = vmatpush1.msra.mxu0 0.0
    %73 = vmatprep.subr.mxu0 0.0
    %74 = vmatpush1.msra.mxu0 0.0
    %75 = vmatprep.subr.mxu0 0.0
    %76 = vmatpush1.msra.mxu0 0.0
    %77 = vmatprep.subr.mxu0 0.0
    %78 = vmatpush1.msra.mxu0 0.0
    %79 = vmatprep.subr.mxu0 0.0
    %80 = vmatpush1.msra.mxu0 0.0
    %81 = vmatprep.subr.mxu0 0.0
    %82 = vmatpush1.msra.mxu0 0.0
    %83 = vmatprep.subr.mxu0 0.0
    %84 = vmatpush1.msra.mxu0 0.0
    %85 = vmatprep.subr.mxu0 0.0
    %86 = vmatpush1.msra.mxu0 0.0
    %87 = vmatprep.subr.mxu0 0.0
    %88 = vmatpush1.msra.mxu0 0.0
    %89 = vmatprep.subr.mxu0 0.0
    %90 = vmatpush1.msra.mxu0 0.0
    %91 = vmatprep.subr.mxu0 0.0
    %92 = vmatpush1.msra.mxu0 0.0
    %93 = vmatprep.subr.mxu0 0.0
    %94 = vmatpush1.msra.mxu0 0.0
    %95 = vmatprep.subr.mxu0 0.0
    %96 = vmatpush1.msra.mxu0 0.0
    %97 = vmatprep.subr.mxu0 0.0
    %98 = vmatpush1.msra.mxu0 0.0
    %99 = vmatprep.subr.mxu0 0.0
    %100 = vmatpush1.msra.mxu0 0.0
    %101 = vmatprep.subr.mxu0 0.0
    %102 = vmatpush1.msra.mxu0 0.0
    %103 = vmatprep.subr.mxu0 0.0
    %104 = vmatpush1.msra.mxu0 0.0
    %105 = vmatprep.subr.mxu0 0.0
    %106 = vmatpush1.msra.mxu0 0.0
    %107 = vmatprep.subr.mxu0 0.0
    %108 = vmatpush1.msra.mxu0 0.0
    %109 = vmatprep.subr.mxu0 0.0
    %110 = vmatpush1.msra.mxu0 0.0
    %111 = vmatprep.subr.mxu0 0.0
    %112 = vmatpush1.msra.mxu0 0.0
    %113 = vmatprep.subr.mxu0 0.0
    %114 = vmatpush1.msra.mxu0 0.0
    %115 = vmatprep.mubr.f32.mxu0 0.0
    %116 = vmatmul.mubr.f32.gmra.mrb[0].mxu0 %v49
    %v117 = vpop.f32.mrb[0].mxu0
    %v118 = vadd.f32 0.0, %v117
    %v119 = vpop.f32.mrb[0].mxu0
    %120 = vdwg.mxu0
    %121 = vst [vmem:[#allocation7] sm:$0x3] %v118
    // Predicated region
    $region18: #{tpu_custom_call.1} parent=1 // pred_check
      _
    $region19: #{tpu_custom_call.1} parent=1 // pred_check_branch
      %123 = sbr.rel (0) target = $region21
    $region20: #{tpu_custom_call.1} parent=1 // pred_region
      %s125 = ssub.s32 32, 32
      %126 = vsyncadd [#allocation4], %s125
      %s128 = sshll.u32 [#allocation7], 4
      %s129 = int_to_ptr.vmem [resolvable:$true] %s128
      %131 = dma.vmem_to_hbm [thread:$0]  %s129, 32, %s2, [#allocation4]
    $region21: #{tpu_custom_call.1} parent=1 // pred_fallthru
      _
    // Predicated region
    $region22: #{tpu_custom_call.1} parent=1 // pred_check
      _
    $region23: #{tpu_custom_call.1} parent=1 // pred_check_branch
      %133 = sbr.rel (0) target = $region25
    $region24: #{tpu_custom_call.1} parent=1 // pred_region
      %134 = dma.done [#allocation4], 32
    $region25: #{tpu_custom_call.1} parent=1 // pred_fallthru
      _
    %135 = vsyncpa [#allocation3], 1
    %136 = vsyncpa [#allocation6], 1
    %137 = vsyncpa [#allocation4], 1

</llo_original>
